<compile_context>
chip_gen: v7x
topology: tpu7x:2x2x1
jax: 0.10.0
libtpu: 0.0.40
codegen_flags: <defaults>
</compile_context>

<pallas_src>
import functools

import jax
import jax.numpy as jnp
from jax.experimental import pallas as pl
from jax.experimental.pallas import tpu as pltpu


HIDDEN = 256  # fixed by the module definition


def _round_up(x, m):
    return (x + m - 1) // m * m


def _cdiv(a, b):
    return (a + b - 1) // b


def _detect_bf16_eup():
    """bf16 tanh on v6e/v7x (bf16 EUP); keep f32 on v5e."""
    try:
        kind = jax.devices()[0].device_kind.lower()
    except Exception:
        return True
    return "v5" not in kind


_TANH_BF16 = _detect_bf16_eup()


def _choose_tile(B, block_batch):
    """Batch tile: multiple of 16 rows, >=4 grid steps when batch allows."""
    steps = max(_cdiv(B, int(block_batch)), min(4, _cdiv(B, 16)), 1)
    bB = _round_up(_cdiv(B, steps), 16)
    Bp = _round_up(B, bB)
    return bB, Bp


def _generator_kernel(x_ref, w1_ref, b1_ref, w2_ref, b2_ref, o_ref, *, tanh_bf16):
    # GEMM 1 on the MXU: bf16 inputs (cast in VMEM), f32 accumulation.
    h = jnp.dot(x_ref[...].astype(jnp.bfloat16), w1_ref[...],
                preferred_element_type=jnp.float32)
    h = h + b1_ref[...]                      # (bB, 256) + (1, 256), f32
    # LeakyReLU(negative_slope=0.1) in f32 on the VPU.
    h = jnp.where(h > 0, h, 0.1 * h)
    # GEMM 2 on the MXU: bf16 activations, f32 accumulate.
    y = jnp.dot(h.astype(jnp.bfloat16), w2_ref[...],
                preferred_element_type=jnp.float32)
    y = y + b2_ref[...]                      # (bB, img_dim) + (1, img_dim), f32
    # Tanh on the EUP (bf16 on v6e/v7x, f32 on v5e); store in output dtype.
    if tanh_bf16:
        y = y.astype(jnp.bfloat16)
    o_ref[...] = jnp.tanh(y).astype(o_ref.dtype)


def prepack_generator_params(w1, b1, w2, b2):
    """One-time weight prep (bf16 MXU operands, 2-D f32 biases) outside the hot path."""
    hidden, img_dim = w2.shape
    assert hidden == HIDDEN and w1.shape[1] == HIDDEN
    w1_bf = w1.astype(jnp.bfloat16)
    w2_bf = w2.astype(jnp.bfloat16)
    b1_2d = b1.reshape(1, HIDDEN).astype(jnp.float32)
    b2_2d = b2.reshape(1, img_dim).astype(jnp.float32)
    return w1_bf, b1_2d, w2_bf, b2_2d


@functools.partial(jax.jit, static_argnames=("block_batch", "tanh_bf16"))
def _generator_forward(x, w1_bf, b1_2d, w2_bf, b2_2d, *, block_batch=512,
                       tanh_bf16=True):
    """Forward pass.  x: (B, z_dim) f32, prepacked weights, returns (B, img_dim) f32."""
    B, z_dim = x.shape
    hidden, img_dim = w2_bf.shape
    assert hidden == HIDDEN and w1_bf.shape == (z_dim, HIDDEN)

    bB, Bp = _choose_tile(B, block_batch)
    x_p = x if Bp == B else jnp.pad(x, ((0, Bp - B), (0, 0)))

    grid = (Bp // bB,)

    # Advisory cost estimate so XLA can schedule around this call.
    flops = 2 * Bp * (z_dim * HIDDEN + HIDDEN * img_dim)
    bytes_accessed = (Bp * z_dim * 4 + w1_bf.size * 2 + w2_bf.size * 2
                      + b1_2d.size * 4 + b2_2d.size * 4 + Bp * img_dim * 4)
    cost = pl.CostEstimate(flops=flops, transcendentals=Bp * img_dim,
                           bytes_accessed=bytes_accessed)

    # VMEM: double-buffered x/out tiles + resident weights; ~3x headroom.
    vmem_needed = (2 * bB * z_dim * 4            # x tiles (f32, 2 buffers)
                   + 2 * bB * img_dim * 4        # out tiles (f32, 2 buffers)
                   + w1_bf.size * 2 + w2_bf.size * 2
                   + b1_2d.size * 4 + b2_2d.size * 4)
    vmem_limit = int(min(max(3 * vmem_needed, 2 * 1024 * 1024),
                         48 * 1024 * 1024))

    out_p = pl.pallas_call(
        functools.partial(_generator_kernel, tanh_bf16=tanh_bf16),
        out_shape=jax.ShapeDtypeStruct((Bp, img_dim), jnp.float32),
        grid_spec=pltpu.PrefetchScalarGridSpec(
            num_scalar_prefetch=0,
            grid=grid,
            in_specs=[
                pl.BlockSpec((bB, z_dim), lambda i: (i, 0)),         # x tile (f32)
                pl.BlockSpec((z_dim, HIDDEN), lambda i: (0, 0)),     # W1 (resident)
                pl.BlockSpec((1, HIDDEN), lambda i: (0, 0)),         # b1
                pl.BlockSpec((HIDDEN, img_dim), lambda i: (0, 0)),   # W2 (resident)
                pl.BlockSpec((1, img_dim), lambda i: (0, 0)),        # b2
            ],
            out_specs=pl.BlockSpec((bB, img_dim), lambda i: (i, 0)),
        ),
        compiler_params=pltpu.CompilerParams(
            dimension_semantics=("parallel",),
            vmem_limit_bytes=vmem_limit,
        ),
        cost_estimate=cost,
    )(x_p, w1_bf, b1_2d, w2_bf, b2_2d)

    return out_p if Bp == B else out_p[:B]


def generator_forward(x, packed_params, *, block_batch=512):
    return _generator_forward(x, *packed_params, block_batch=block_batch,
                              tanh_bf16=_TANH_BF16)


def init_generator_params(key, z_dim, img_dim):
    """Deterministic parameter init (uniform, Kaiming-ish bounds like nn.Linear)."""
    k1, k2, k3, k4 = jax.random.split(key, 4)
    bound1 = 1.0 / jnp.sqrt(z_dim)
    bound2 = 1.0 / jnp.sqrt(HIDDEN)
    w1 = jax.random.uniform(k1, (z_dim, HIDDEN), jnp.float32, -bound1, bound1)
    b1 = jax.random.uniform(k2, (HIDDEN,), jnp.float32, -bound1, bound1)
    w2 = jax.random.uniform(k3, (HIDDEN, img_dim), jnp.float32, -bound2, bound2)
    b2 = jax.random.uniform(k4, (img_dim,), jnp.float32, -bound2, bound2)
    return w1, b1, w2, b2


def _reference_f32(x, w1, b1, w2, b2):
    h = x @ w1 + b1
    h = jnp.where(h > 0, h, 0.1 * h)
    return jnp.tanh(h @ w2 + b2)


def _reference_bf16(x, w1, b1, w2, b2, tanh_bf16):
    # Same precision model as the kernel (bf16 MXU inputs, f32 accumulate).
    h = jnp.dot(x.astype(jnp.bfloat16), w1.astype(jnp.bfloat16),
                preferred_element_type=jnp.float32) + b1
    h = jnp.where(h > 0, h, 0.1 * h)
    y = jnp.dot(h.astype(jnp.bfloat16), w2.astype(jnp.bfloat16),
                preferred_element_type=jnp.float32) + b2
    if tanh_bf16:
        y = y.astype(jnp.bfloat16)
    return jnp.tanh(y).astype(jnp.float32)


def _check(batch, z_dim, img_dim, key, block_batch=512):
    kx, kp = jax.random.split(key)
    x = jax.random.normal(kx, (batch, z_dim), jnp.float32)
    w1, b1, w2, b2 = init_generator_params(kp, z_dim, img_dim)
    packed = prepack_generator_params(w1, b1, w2, b2)

    out = generator_forward(x, packed, block_batch=block_batch)
    out = jax.block_until_ready(out)
    assert out.shape == (batch, img_dim)

    ref_bf = _reference_bf16(x, w1, b1, w2, b2, _TANH_BF16)
    ref_f32 = _reference_f32(x, w1, b1, w2, b2)
    assert jnp.allclose(out, ref_bf, atol=5e-3, rtol=5e-3), "bf16-model mismatch"
    assert jnp.allclose(out, ref_f32, atol=5e-2, rtol=5e-2), "f32 reference drift"


if __name__ == "__main__":
    key = jax.random.PRNGKey(0)
    k1, k2 = jax.random.split(key)

    # Small demo shape (single-tile path, lane-aligned img_dim, row padding 8->16).
    _check(batch=8, z_dim=64, img_dim=128, key=k1)

    # MNIST-like img_dim (784, last store chunk masked) with batch tiling:
    # B=64 -> bB=16, grid=4 (>=2 steps per TC on v7x), no wrapper output slice.
    _check(batch=64, z_dim=64, img_dim=784, key=k2, block_batch=512)

    print("KERNEL_OK")
</pallas_src>

<mosaic_0001>
module attributes {stable_mosaic.version = 11 : i64} {
  func.func @_generator_kernel(%arg0: i32, %arg1: memref<16x64xf32, #tpu.memory_space<vmem>>, %arg2: memref<64x256xbf16, #tpu.memory_space<vmem>>, %arg3: memref<1x256xf32, #tpu.memory_space<vmem>>, %arg4: memref<256x128xbf16, #tpu.memory_space<vmem>>, %arg5: memref<1x128xf32, #tpu.memory_space<vmem>>, %arg6: memref<16x128xf32, #tpu.memory_space<vmem>>) attributes {dimension_semantics = [#tpu.dimension_semantics<parallel>], iteration_bounds = array<i64: 1>, scalar_prefetch = 0 : i64, scratch_operands = 0 : i64, tpu.core_type = #tpu.core_type<tc>, window_params = [{transform_indices = @transform_0, window_bounds = array<i64: 16, 64>}, {pipeline_mode = #tpu.pipeline_mode<synchronous>, transform_indices = @transform_1, window_bounds = array<i64: 64, 256>}, {pipeline_mode = #tpu.pipeline_mode<synchronous>, transform_indices = @transform_2, window_bounds = array<i64: 1, 256>}, {pipeline_mode = #tpu.pipeline_mode<synchronous>, transform_indices = @transform_3, window_bounds = array<i64: 256, 128>}, {pipeline_mode = #tpu.pipeline_mode<synchronous>, transform_indices = @transform_4, window_bounds = array<i64: 1, 128>}, {transform_indices = @transform_5, window_bounds = array<i64: 16, 128>}]} {
    %c0 = arith.constant 0 : index
    %c0_0 = arith.constant 0 : index
    %0 = vector.load %arg1[%c0, %c0_0] : memref<16x64xf32, #tpu.memory_space<vmem>>, vector<16x64xf32>
    %1 = arith.truncf %0 : vector<16x64xf32> to vector<16x64xbf16>
    %c0_1 = arith.constant 0 : index
    %c0_2 = arith.constant 0 : index
    %2 = vector.load %arg2[%c0_1, %c0_2] : memref<64x256xbf16, #tpu.memory_space<vmem>>, vector<64x256xbf16>
    %cst = arith.constant dense<0.000000e+00> : vector<16x256xf32>
    %3 = tpu.matmul %1, %2, %cst {dimension_numbers = #tpu.dot_dimension_numbers<[1], [0], [0], [1], [0, 0, 1, 1], [], []>} : vector<16x64xbf16>, vector<64x256xbf16>, vector<16x256xf32> -> vector<16x256xf32>
    %c0_3 = arith.constant 0 : index
    %c0_4 = arith.constant 0 : index
    %4 = vector.load %arg3[%c0_3, %c0_4] : memref<1x256xf32, #tpu.memory_space<vmem>>, vector<1x256xf32>
    %5 = vector.broadcast %4 : vector<1x256xf32> to vector<16x256xf32>
    %6 = arith.addf %3, %5 : vector<16x256xf32>
    %cst_5 = arith.constant 0.000000e+00 : f32
    %7 = vector.broadcast %cst_5 : f32 to vector<16x256xf32>
    %8 = arith.cmpf ogt, %6, %7 : vector<16x256xf32>
    %cst_6 = arith.constant 1.000000e-01 : f32
    %9 = vector.broadcast %cst_6 : f32 to vector<16x256xf32>
    %10 = arith.mulf %9, %6 : vector<16x256xf32>
    %11 = arith.select %8, %6, %10 : vector<16x256xi1>, vector<16x256xf32>
    %12 = arith.truncf %11 : vector<16x256xf32> to vector<16x256xbf16>
    %c0_7 = arith.constant 0 : index
    %c0_8 = arith.constant 0 : index
    %13 = vector.load %arg4[%c0_7, %c0_8] : memref<256x128xbf16, #tpu.memory_space<vmem>>, vector<256x128xbf16>
    %cst_9 = arith.constant dense<0.000000e+00> : vector<16x128xf32>
    %14 = tpu.matmul %12, %13, %cst_9 {dimension_numbers = #tpu.dot_dimension_numbers<[1], [0], [0], [1], [0, 0, 1, 1], [], []>} : vector<16x256xbf16>, vector<256x128xbf16>, vector<16x128xf32> -> vector<16x128xf32>
    %c0_10 = arith.constant 0 : index
    %c0_11 = arith.constant 0 : index
    %15 = vector.load %arg5[%c0_10, %c0_11] : memref<1x128xf32, #tpu.memory_space<vmem>>, vector<1x128xf32>
    %16 = vector.broadcast %15 : vector<1x128xf32> to vector<16x128xf32>
    %17 = arith.addf %14, %16 : vector<16x128xf32>
    %18 = arith.truncf %17 : vector<16x128xf32> to vector<16x128xbf16>
    %19 = math.tanh %18 : vector<16x128xbf16>
    %20 = arith.extf %19 : vector<16x128xbf16> to vector<16x128xf32>
    %c0_12 = arith.constant 0 : index
    %c0_13 = arith.constant 0 : index
    %21 = vector.load %arg6[%c0_12, %c0_13] : memref<16x128xf32, #tpu.memory_space<vmem>>, vector<16x128xf32>
    tpu.vector_store %arg6[%c0_12, %c0_13], %20 {strides = array<i32>} : memref<16x128xf32, #tpu.memory_space<vmem>>, vector<16x128xf32>,
    return
  }
  func.func @transform_0(%arg0: i32) -> (i32, i32) {
    %c0_i32 = arith.constant 0 : i32
    %c0_i32_0 = arith.constant 0 : i32
    return %arg0, %c0_i32 : i32, i32
  }
  func.func @transform_1(%arg0: i32) -> (i32, i32) {
    %c0_i32 = arith.constant 0 : i32
    %c0_i32_0 = arith.constant 0 : i32
    %c0_i32_1 = arith.constant 0 : i32
    return %c0_i32, %c0_i32_0 : i32, i32
  }
  func.func @transform_2(%arg0: i32) -> (i32, i32) {
    %c0_i32 = arith.constant 0 : i32
    %c0_i32_0 = arith.constant 0 : i32
    %c0_i32_1 = arith.constant 0 : i32
    return %c0_i32, %c0_i32_0 : i32, i32
  }
  func.func @transform_3(%arg0: i32) -> (i32, i32) {
    %c0_i32 = arith.constant 0 : i32
    %c0_i32_0 = arith.constant 0 : i32
    %c0_i32_1 = arith.constant 0 : i32
    return %c0_i32, %c0_i32_0 : i32, i32
  }
  func.func @transform_4(%arg0: i32) -> (i32, i32) {
    %c0_i32 = arith.constant 0 : i32
    %c0_i32_0 = arith.constant 0 : i32
    %c0_i32_1 = arith.constant 0 : i32
    return %c0_i32, %c0_i32_0 : i32, i32
  }
  func.func @transform_5(%arg0: i32) -> (i32, i32) {
    %c0_i32 = arith.constant 0 : i32
    %c0_i32_0 = arith.constant 0 : i32
    return %arg0, %c0_i32 : i32, i32
  }
}

</mosaic_0001>

<llo_original>
// kernel: _generator_forward.1
$region0: #{_generator_forward.1}
  #allocation0 [shape = 'u32[]', space=smem, size = 0x4, offset = 0x4, fixed_abs, tag = 'smem constant byte address 0x4 - core index']
  #allocation1 [shape = 'u32[144,128]{1,0:T(1,128)}', space=vmem, size = 0x12000, scoped, tag = 'internal scratch']
  %s0 = inlined_call_operand.vmem [shape: f32[16,64], index: 0, kind: input, shape index: {}]
  %s1 = inlined_call_operand.hbm [shape: bf16[64,256], index: 1, kind: input, shape index: {}]
  %s2 = inlined_call_operand.vmem [shape: f32[1,256], index: 2, kind: input, shape index: {}]
  %s3 = inlined_call_operand.hbm [shape: bf16[256,128], index: 3, kind: input, shape index: {}]
  %s4 = inlined_call_operand.vmem [shape: f32[1,128], index: 4, kind: input, shape index: {}]
  %s5 = inlined_call_operand.vmem [shape: f32[16,128], index: 5, kind: output, shape index: {}]
  %s6 = sld [smem:[#allocation0]]
  $region38: #{_generator_forward.1} parent=0
    _
  %s8 = ssub.s32 1, %s6
  %s9 = scalar_select 0, %s8, %s6
  $region1: #{_generator_forward.1} parent=0
    #allocation2 [shape = 'u8[32768]{0}', space=vmem, size = 0x8000, scoped, tag = 'input window, operand 1, single buffered']
    #allocation3 [shape = 's32[1]{0}', space=sflag, size = 0x4, scoped, tag = 'scoped memory for _generator_forward.1']
    #allocation4 [shape = 'u8[65536]{0}', space=vmem, size = 0x10000, scoped, tag = 'input window, operand 3, single buffered']
    #allocation5 [shape = 's32[1]{0}', space=sflag, size = 0x4, scoped, tag = 'scoped memory for _generator_forward.1']
    %10 = vsyncpa [#allocation3], 0
    %11 = vsyncpa [#allocation5], 0
    // Predicated region
    $region2: #{_generator_forward.1} parent=1 // pred_check
      _
    $region3: #{_generator_forward.1} parent=1 // pred_check_branch
      %13 = sbr.rel (0) target = $region5
    $region4: #{_generator_forward.1} parent=1 // pred_region
      _
    $region5: #{_generator_forward.1} parent=1 // pred_fallthru
      _
    // Predicated region
    $region6: #{_generator_forward.1} parent=1 // pred_check
      _
    $region7: #{_generator_forward.1} parent=1 // pred_check_branch
      %15 = sbr.rel (0) target = $region9
    $region8: #{_generator_forward.1} parent=1 // pred_region
      %s17 = ssub.s32 1024, 1024
      %18 = vsyncadd [#allocation3], %s17
      %s19 = sshll.u32 [#allocation2], 4
      %s20 = int_to_ptr.vmem [resolvable:$true] %s19
      %25 = dma.hbm_to_vmem [thread:$0]  %s1, 1024, %s20, [#allocation3], 128, 128, 8
    $region9: #{_generator_forward.1} parent=1 // pred_fallthru
      _
    // Predicated region
    $region10: #{_generator_forward.1} parent=1 // pred_check
      _
    $region11: #{_generator_forward.1} parent=1 // pred_check_branch
      %27 = sbr.rel (0) target = $region13
    $region12: #{_generator_forward.1} parent=1 // pred_region
      _
    $region13: #{_generator_forward.1} parent=1 // pred_fallthru
      _
    // Predicated region
    $region14: #{_generator_forward.1} parent=1 // pred_check
      _
    $region15: #{_generator_forward.1} parent=1 // pred_check_branch
      %29 = sbr.rel (0) target = $region17
    $region16: #{_generator_forward.1} parent=1 // pred_region
      %s31 = ssub.s32 2048, 2048
      %32 = vsyncadd [#allocation5], %s31
      %s33 = sshll.u32 [#allocation4], 4
      %s34 = int_to_ptr.vmem [resolvable:$true] %s33
      %39 = dma.hbm_to_vmem [thread:$0]  %s3, 2048, %s34, [#allocation5], 64, 64, 4
    $region17: #{_generator_forward.1} parent=1 // pred_fallthru
      _
    // Predicated region
    $region18: #{_generator_forward.1} parent=1 // pred_check
      _
    $region19: #{_generator_forward.1} parent=1 // pred_check_branch
      %41 = sbr.rel (0) target = $region21
    $region20: #{_generator_forward.1} parent=1 // pred_region
      _
    $region21: #{_generator_forward.1} parent=1 // pred_fallthru
      _
    // Predicated region
    $region22: #{_generator_forward.1} parent=1 // pred_check
      _
    $region23: #{_generator_forward.1} parent=1 // pred_check_branch
      %43 = sbr.rel (0) target = $region25
    $region24: #{_generator_forward.1} parent=1 // pred_region
      %44 = dma.done [#allocation3], 1024
    $region25: #{_generator_forward.1} parent=1 // pred_fallthru
      _
    // Predicated region
    $region26: #{_generator_forward.1} parent=1 // pred_check
      _
    $region27: #{_generator_forward.1} parent=1 // pred_check_branch
      %46 = sbr.rel (0) target = $region29
    $region28: #{_generator_forward.1} parent=1 // pred_region
      %47 = dma.done [#allocation5], 2048
    $region29: #{_generator_forward.1} parent=1 // pred_fallthru
      _
    %v49 = vld [vmem:[%s0] sm:$0xff]
    %v50 = vld [vmem:[%s0 + $0x8] sm:$0xff]
    %v51 = vpack.c.bf16 %v50, %v49
    %v52 = vld [vmem:[#allocation2] sm:$0xff]
    %v53 = vld [vmem:[#allocation2 + $0x8] sm:$0xff]
    %v54 = vld [vmem:[#allocation2 + $0x10] sm:$0xff]
    %v55 = vld [vmem:[#allocation2 + $0x18] sm:$0xff]
    %v56 = vld [vmem:[#allocation2 + $0x20] sm:$0xff]
    %v57 = vld [vmem:[#allocation2 + $0x28] sm:$0xff]
    %v58 = vld [vmem:[#allocation2 + $0x30] sm:$0xff]
    %v59 = vld [vmem:[#allocation2 + $0x38] sm:$0xff]
    %v60 = vld [vmem:[%s2] sm:$0x3]
    %v62 = vlaneseq
    %v63 = vshrl.u32 %v62, 7
    %v64 = vsub.s32 0, %v63
    %v65 = vrot.slane %v60, %v64
    %v66 = vlaneseq
    %v67 = vshrl.u32 %v66, 7
    %v68 = vsub.s32 1, %v67
    %v69 = vrot.slane %v60, %v68
    %v80 = vunpack.c.l.b16 %v52
    %v81 = vunpack.c.h.b16 %v52
    %v82 = vunpack.c.l.b16 %v53
    %v83 = vunpack.c.h.b16 %v53
    %v84 = vunpack.c.l.b16 %v54
    %v85 = vunpack.c.h.b16 %v54
    %v86 = vunpack.c.l.b16 %v55
    %v87 = vunpack.c.h.b16 %v55
    %v88 = vunpack.c.l.b16 %v56
    %v89 = vunpack.c.h.b16 %v56
    %v90 = vunpack.c.l.b16 %v57
    %v91 = vunpack.c.h.b16 %v57
    %v92 = vunpack.c.l.b16 %v58
    %v93 = vunpack.c.h.b16 %v58
    %v94 = vunpack.c.l.b16 %v59
    %v95 = vunpack.c.h.b16 %v59
    %v96 = vpack.c.b16 %v82, %v80
    %v97 = vpack.c.b16 %v83, %v81
    %v98 = vpack.c.b16 %v86, %v84
    %v99 = vpack.c.b16 %v87, %v85
    %v100 = vpack.c.b16 %v90, %v88
    %v101 = vpack.c.b16 %v91, %v89
    %v102 = vpack.c.b16 %v94, %v92
    %v103 = vpack.c.b16 %v95, %v93
    %vm112 = vcmask 523264
    %v114 = vsel %vm112, %v51, 0
    %116 = vmatprep.subr.bf16.mxu0 %v97
    %117 = vmatpush1.bf16.msra.mxu0 %v96
    %118 = vmatprep.subr.bf16.mxu0 %v99
    %119 = vmatpush1.bf16.msra.mxu0 %v98
    %120 = vmatprep.subr.bf16.mxu0 %v101
    %121 = vmatpush1.bf16.msra.mxu0 %v100
    %122 = vmatprep.subr.bf16.mxu0 %v103
    %123 = vmatpush1.bf16.msra.mxu0 %v102
    %124 = vmatprep.subr.bf16.mxu0 0
    %125 = vmatpush1.bf16.msra.mxu0 0
    %126 = vmatprep.subr.bf16.mxu0 0
    %127 = vmatpush1.bf16.msra.mxu0 0
    %128 = vmatprep.subr.bf16.mxu0 0
    %129 = vmatpush1.bf16.msra.mxu0 0
    %130 = vmatprep.subr.bf16.mxu0 0
    %131 = vmatpush1.bf16.msra.mxu0 0
    %132 = vmatprep.subr.bf16.mxu0 0
    %133 = vmatpush1.bf16.msra.mxu0 0
    %134 = vmatprep.subr.bf16.mxu0 0
    %135 = vmatpush1.bf16.msra.mxu0 0
    %136 = vmatprep.subr.bf16.mxu0 0
    %137 = vmatpush1.bf16.msra.mxu0 0
    %138 = vmatprep.subr.bf16.mxu0 0
    %139 = vmatpush1.bf16.msra.mxu0 0
    %140 = vmatprep.subr.bf16.mxu0 0
    %141 = vmatpush1.bf16.msra.mxu0 0
    %142 = vmatprep.subr.bf16.mxu0 0
    %143 = vmatpush1.bf16.msra.mxu0 0
    %144 = vmatprep.subr.bf16.mxu0 0
    %145 = vmatpush1.bf16.msra.mxu0 0
    %146 = vmatprep.subr.bf16.mxu0 0
    %147 = vmatpush1.bf16.msra.mxu0 0
    %148 = vmatprep.mubr.bf16.mxu0 0
    %149 = vmatmul.mubr.bf16.gmra.mrb[0].mxu0 %v114
    %v150 = vpop.f32.mrb[0].mxu0
    %v151 = vadd.f32 %v65, %v150
    %v152 = vpop.f32.mrb[0].mxu0
    %v153 = vadd.f32 %v69, %v152
    %v154 = vpop.f32.mrb[0].mxu0
    %v155 = vadd.f32 %v65, %v154
    %v156 = vpop.f32.mrb[0].mxu0
    %v157 = vadd.f32 %v69, %v156
    %158 = vdwg.mxu0
    %vm159 = vcmp.gt.f32.partialorder %v151, 0.0
    %vm160 = vcmp.gt.f32.partialorder %v153, 0.0
    %vm161 = vcmp.gt.f32.partialorder %v155, 0.0
    %vm162 = vcmp.gt.f32.partialorder %v157, 0.0
    %v163 = vmul.f32 %v151, 0.1
    %v164 = vmul.f32 %v153, 0.1
    %v165 = vmul.f32 %v155, 0.1
    %v166 = vmul.f32 %v157, 0.1
    %v167 = vsel %vm159, %v151, %v163
    %v168 = vsel %vm160, %v153, %v164
    %v169 = vsel %vm161, %v155, %v165
    %v170 = vsel %vm162, %v157, %v166
    %v171 = vpack.c.bf16 %v169, %v167
    %v172 = vpack.c.bf16 %v170, %v168
    %v173 = vld [vmem:[#allocation4] sm:$0xf]
    %v174 = vld [vmem:[#allocation4 + $0x4] sm:$0xf]
    %v175 = vld [vmem:[#allocation4 + $0x8] sm:$0xf]
    %v176 = vld [vmem:[#allocation4 + $0xc] sm:$0xf]
    %v177 = vld [vmem:[#allocation4 + $0x10] sm:$0xf]
    %v178 = vld [vmem:[#allocation4 + $0x14] sm:$0xf]
    %v179 = vld [vmem:[#allocation4 + $0x18] sm:$0xf]
    %v180 = vld [vmem:[#allocation4 + $0x1c] sm:$0xf]
    %v181 = vld [vmem:[#allocation4 + $0x20] sm:$0xf]
    %v182 = vld [vmem:[#allocation4 + $0x24] sm:$0xf]
    %v183 = vld [vmem:[#allocation4 + $0x28] sm:$0xf]
    %v184 = vld [vmem:[#allocation4 + $0x2c] sm:$0xf]
    %v185 = vld [vmem:[#allocation4 + $0x30] sm:$0xf]
    %v186 = vld [vmem:[#allocation4 + $0x34] sm:$0xf]
    %v187 = vld [vmem:[#allocation4 + $0x38] sm:$0xf]
    %v188 = vld [vmem:[#allocation4 + $0x3c] sm:$0xf]
    %v189 = vld [vmem:[#allocation4 + $0x40] sm:$0xf]
    %v190 = vld [vmem:[#allocation4 + $0x44] sm:$0xf]
    %v191 = vld [vmem:[#allocation4 + $0x48] sm:$0xf]
    %v192 = vld [vmem:[#allocation4 + $0x4c] sm:$0xf]
    %v193 = vld [vmem:[#allocation4 + $0x50] sm:$0xf]
    %v194 = vld [vmem:[#allocation4 + $0x54] sm:$0xf]
    %v195 = vld [vmem:[#allocation4 + $0x58] sm:$0xf]
    %v196 = vld [vmem:[#allocation4 + $0x5c] sm:$0xf]
    %v197 = vld [vmem:[#allocation4 + $0x60] sm:$0xf]
    %v198 = vld [vmem:[#allocation4 + $0x64] sm:$0xf]
    %v199 = vld [vmem:[#allocation4 + $0x68] sm:$0xf]
    %v200 = vld [vmem:[#allocation4 + $0x6c] sm:$0xf]
    %v201 = vld [vmem:[#allocation4 + $0x70] sm:$0xf]
    %v202 = vld [vmem:[#allocation4 + $0x74] sm:$0xf]
    %v203 = vld [vmem:[#allocation4 + $0x78] sm:$0xf]
    %v204 = vld [vmem:[#allocation4 + $0x7c] sm:$0xf]
    %v205 = vld [vmem:[%s4] sm:$0x1]
    %v207 = vlaneseq
    %v208 = vshrl.u32 %v207, 7
    %v209 = vsub.s32 0, %v208
    %v210 = vrot.slane %v205, %v209
    %v244 = vunpack.c.l.b16 %v173
    %v245 = vunpack.c.l.b16 %v174
    %v246 = vunpack.c.l.b16 %v175
    %v247 = vunpack.c.l.b16 %v176
    %v248 = vunpack.c.l.b16 %v177
    %v249 = vunpack.c.l.b16 %v178
    %v250 = vunpack.c.l.b16 %v179
    %v251 = vunpack.c.l.b16 %v180
    %v252 = vunpack.c.l.b16 %v181
    %v253 = vunpack.c.l.b16 %v182
    %v254 = vunpack.c.l.b16 %v183
    %v255 = vunpack.c.l.b16 %v184
    %v256 = vunpack.c.l.b16 %v185
    %v257 = vunpack.c.l.b16 %v186
    %v258 = vunpack.c.l.b16 %v187
    %v259 = vunpack.c.l.b16 %v188
    %v260 = vunpack.c.l.b16 %v189
    %v261 = vunpack.c.l.b16 %v190
    %v262 = vunpack.c.l.b16 %v191
    %v263 = vunpack.c.l.b16 %v192
    %v264 = vunpack.c.l.b16 %v193
    %v265 = vunpack.c.l.b16 %v194
    %v266 = vunpack.c.l.b16 %v195
    %v267 = vunpack.c.l.b16 %v196
    %v268 = vunpack.c.l.b16 %v197
    %v269 = vunpack.c.l.b16 %v198
    %v270 = vunpack.c.l.b16 %v199
    %v271 = vunpack.c.l.b16 %v200
    %v272 = vunpack.c.l.b16 %v201
    %v273 = vunpack.c.l.b16 %v202
    %v274 = vunpack.c.l.b16 %v203
    %v275 = vunpack.c.l.b16 %v204
    %v276 = vpack.c.b16 %v245, %v244
    %v277 = vpack.c.b16 %v247, %v246
    %v278 = vpack.c.b16 %v249, %v248
    %v279 = vpack.c.b16 %v251, %v250
    %v280 = vpack.c.b16 %v253, %v252
    %v281 = vpack.c.b16 %v255, %v254
    %v282 = vpack.c.b16 %v257, %v256
    %v283 = vpack.c.b16 %v259, %v258
    %v284 = vpack.c.b16 %v261, %v260
    %v285 = vpack.c.b16 %v263, %v262
    %v286 = vpack.c.b16 %v265, %v264
    %v287 = vpack.c.b16 %v267, %v266
    %v288 = vpack.c.b16 %v269, %v268
    %v289 = vpack.c.b16 %v271, %v270
    %v290 = vpack.c.b16 %v273, %v272
    %v291 = vpack.c.b16 %v275, %v274
    %308 = vmatprep.subr.bf16.mxu0 0
    %309 = vmatpush1.bf16.msra.mxu0 %v276
    %310 = vmatprep.subr.bf16.mxu0 0
    %311 = vmatpush1.bf16.msra.mxu0 %v277
    %312 = vmatprep.subr.bf16.mxu0 0
    %313 = vmatpush1.bf16.msra.mxu0 %v278
    %314 = vmatprep.subr.bf16.mxu0 0
    %315 = vmatpush1.bf16.msra.mxu0 %v279
    %316 = vmatprep.subr.bf16.mxu0 0
    %317 = vmatpush1.bf16.msra.mxu0 %v280
    %318 = vmatprep.subr.bf16.mxu0 0
    %319 = vmatpush1.bf16.msra.mxu0 %v281
    %320 = vmatprep.subr.bf16.mxu0 0
    %321 = vmatpush1.bf16.msra.mxu0 %v282
    %322 = vmatprep.subr.bf16.mxu0 0
    %323 = vmatpush1.bf16.msra.mxu0 %v283
    %324 = vmatprep.subr.bf16.mxu0 0
    %325 = vmatpush1.bf16.msra.mxu0 %v284
    %326 = vmatprep.subr.bf16.mxu0 0
    %327 = vmatpush1.bf16.msra.mxu0 %v285
    %328 = vmatprep.subr.bf16.mxu0 0
    %329 = vmatpush1.bf16.msra.mxu0 %v286
    %330 = vmatprep.subr.bf16.mxu0 0
    %331 = vmatpush1.bf16.msra.mxu0 %v287
    %332 = vmatprep.subr.bf16.mxu0 0
    %333 = vmatpush1.bf16.msra.mxu0 %v288
    %334 = vmatprep.subr.bf16.mxu0 0
    %335 = vmatpush1.bf16.msra.mxu0 %v289
    %336 = vmatprep.subr.bf16.mxu0 0
    %337 = vmatpush1.bf16.msra.mxu0 %v290
    %338 = vmatprep.subr.bf16.mxu0 0
    %339 = vmatpush1.bf16.msra.mxu0 %v291
    %340 = vmatprep.mubr.bf16.mxu0 %v172
    %341 = vmatmul.mubr.bf16.gmra.mrb[0].mxu0 %v171
    %v342 = vpop.f32.mrb[0].mxu0
    %v343 = vadd.f32 %v210, %v342
    %v344 = vpop.f32.mrb[0].mxu0
    %v345 = vpop.f32.mrb[0].mxu0
    %v346 = vadd.f32 %v210, %v345
    %v347 = vpop.f32.mrb[0].mxu0
    %348 = vdwg.mxu0
    %v349 = vpack.c.bf16 %v346, %v343
    %v350 = vtanh.bf16.pop %v349
    %v351 = vunpack.c.l.bf16 %v350
    %v352 = vunpack.c.h.bf16 %v350
    %353 = vst [vmem:[%s5] sm:$0xff] %v351
    %354 = vst [vmem:[%s5 + $0x8] sm:$0xff] %v352
    // Predicated region
    $region30: #{_generator_forward.1} parent=1 // pred_check
      _
    $region31: #{_generator_forward.1} parent=1 // pred_check_branch
      %356 = sbr.rel (0) target = $region33
    $region32: #{_generator_forward.1} parent=1 // pred_region
      _
    $region33: #{_generator_forward.1} parent=1 // pred_fallthru
      _
    // Predicated region
    $region34: #{_generator_forward.1} parent=1 // pred_check
      _
    $region35: #{_generator_forward.1} parent=1 // pred_check_branch
      %358 = sbr.rel (0) target = $region37
    $region36: #{_generator_forward.1} parent=1 // pred_region
      _
    $region37: #{_generator_forward.1} parent=1 // pred_fallthru
      _
    %359 = vsyncpa [#allocation3], 1
    %360 = vsyncpa [#allocation5], 1

</llo_original>
